<compile_context>
chip_gen: v7x
topology: tpu7x:2x2x1
jax: 0.10.0
libtpu: 0.0.40
codegen_flags: <defaults>
</compile_context>

<pallas_src>
import jax
import jax.numpy as jnp
from jax.experimental import pallas as pl
from jax.experimental.pallas import tpu as pltpu


def _mean_pool_kernel(h_ref, m_ref, o_ref, acc_ref, cnt_ref):
    # h_ref:   (TB, tS, H)  hidden states, native dtype (bf16 / f32)
    # m_ref:   (TB, 1, tS)  attention mask, f32
    # o_ref:   (TB, 1, H)   output, f32
    # acc_ref: (TB, 1, H)   f32 running masked sum   (VMEM scratch, resident)
    # cnt_ref: (TB, 1, 1)   f32 running mask count   (VMEM scratch, resident)
    s = pl.program_id(1)

    @pl.when(s == 0)
    def _init():
        acc_ref[...] = jnp.zeros_like(acc_ref)
        cnt_ref[...] = jnp.zeros_like(cnt_ref)

    h = h_ref[...].astype(jnp.float32)                 # f32 accumulation
    m = m_ref[...]                                     # (TB, 1, tS) f32

    # masked partial sum over this sequence tile
    acc_ref[...] += jnp.sum(h * m[:, 0, :, None], axis=1, keepdims=True)
    cnt_ref[...] += jnp.sum(m, axis=2, keepdims=True)

    @pl.when(s == pl.num_programs(1) - 1)
    def _finalize():
        # Clamp + divide only once, after all sequence tiles are accumulated.
        denom = jnp.maximum(cnt_ref[...], jnp.float32(1e-9))   # (TB, 1, 1)
        inv = pl.reciprocal(denom, approx=False)               # 1 recip per row
        o_ref[...] = (acc_ref[...] * inv).astype(o_ref.dtype)


def mean_pooling(last_hidden_state, attention_mask, *, seq_tile=None, batch_tile=None):
    """Masked mean pooling over the sequence dimension.

    last_hidden_state: [B, S, H] float (bf16 / f32 — kept in native dtype)
    attention_mask:    [B, S]    any numeric dtype (treated as float, like torch .float())
    returns:           [B, H]    float32
    """
    B, S, H = last_hidden_state.shape
    elem = jnp.dtype(last_hidden_state.dtype).itemsize

    # ----- choose tiles ---------------------------------------------------
    BUDGET = 2 * 1024 * 1024  # ~2 MiB of hidden-state bytes per pipeline buffer

    if seq_tile is not None:
        tS = min(int(seq_tile), S)
    elif S * H * elem > BUDGET:
        tS = BUDGET // (H * elem)
    else:
        tS = S

    if tS < S:
        # When the sequence is tiled, the (TB, 1, tS) mask block needs its lane
        # dim to be a multiple of 128.
        tS = max(128, (tS // 128) * 128)
        if tS >= S:
            tS = S

    if tS == S:
        # Untiled sequence: pack several batch rows per grid step.
        if batch_tile is not None:
            TB = int(batch_tile)
        else:
            TB = max(1, BUDGET // max(S * H * elem, 1))
        TB = max(1, min(TB, B))
        while B % TB:
            TB -= 1
    else:
        TB = 1

    # ----- pad the sequence so tS divides it (zero mask => no contribution) --
    n_s = -(-S // tS)
    S_pad = n_s * tS
    h = last_hidden_state
    mask = attention_mask
    if S_pad != S:
        h = jnp.pad(h, ((0, 0), (0, S_pad - S), (0, 0)))
        mask = jnp.pad(mask, ((0, 0), (0, S_pad - S)))
    mask3 = mask.reshape(B, 1, S_pad).astype(jnp.float32)

    # ----- VMEM budget for the chosen tiles (double-buffered) ---------------
    tile_bytes = TB * tS * H * elem + TB * tS * 4 + TB * H * 4
    scratch_bytes = TB * H * 4 + TB * 4
    vmem_limit = int(2 * tile_bytes + scratch_bytes + (8 << 20))

    out = pl.pallas_call(
        _mean_pool_kernel,
        out_shape=jax.ShapeDtypeStruct((B, 1, H), jnp.float32),
        grid_spec=pltpu.PrefetchScalarGridSpec(
            num_scalar_prefetch=0,
            grid=(B // TB, S_pad // tS),
            in_specs=[
                pl.BlockSpec((TB, tS, H), lambda b, s: (b, s, 0)),
                pl.BlockSpec((TB, 1, tS), lambda b, s: (b, 0, s)),
            ],
            out_specs=pl.BlockSpec((TB, 1, H), lambda b, s: (b, 0, 0)),
            scratch_shapes=[
                pltpu.VMEM((TB, 1, H), jnp.float32),
                pltpu.VMEM((TB, 1, 1), jnp.float32),
            ],
        ),
        compiler_params=pltpu.CompilerParams(
            dimension_semantics=("parallel", "arbitrary"),
            vmem_limit_bytes=vmem_limit,
        ),
    )(h, mask3)  # NOTE: hidden states passed in native dtype (no host-side f32 upcast)

    return out.reshape(B, H)


def _mean_pooling_ref(last_hidden_state, attention_mask):
    # Pure-JAX reference mirroring the PyTorch forward exactly.
    m = attention_mask[..., None].astype(jnp.float32)            # [B, S, 1]
    sum_emb = jnp.sum(last_hidden_state.astype(jnp.float32) * m, axis=1)
    sum_mask = jnp.maximum(jnp.sum(m, axis=1), jnp.float32(1e-9))
    return sum_emb / sum_mask


if __name__ == "__main__":
    key = jax.random.PRNGKey(0)
    k_h1, k_m1, k_h2, k_m2 = jax.random.split(key, 4)

    # Case 1: small shapes -> untiled sequence, batch rows packed per grid step.
    B, S, H = 2, 8, 32
    h1 = jax.random.normal(k_h1, (B, S, H), dtype=jnp.float32)
    m1 = (jax.random.uniform(k_m1, (B, S)) > 0.3).astype(jnp.int32)
    out1 = jax.block_until_ready(mean_pooling(h1, m1))
    ref1 = _mean_pooling_ref(h1, m1)
    assert out1.shape == (B, H), out1.shape
    assert jnp.allclose(out1, ref1, atol=1e-5, rtol=1e-5), "mismatch vs reference (case 1)"

    # Case 2: force the sequence-tiled accumulator path (with padding) on bf16 input.
    B2, S2, H2 = 2, 200, 128
    h2 = jax.random.normal(k_h2, (B2, S2, H2), dtype=jnp.bfloat16)
    m2 = (jax.random.uniform(k_m2, (B2, S2)) > 0.3).astype(jnp.int32)
    out2 = jax.block_until_ready(mean_pooling(h2, m2, seq_tile=128))
    ref2 = _mean_pooling_ref(h2, m2)
    assert out2.shape == (B2, H2), out2.shape
    assert jnp.allclose(out2, ref2, atol=1e-3, rtol=1e-3), "mismatch vs reference (case 2)"

    print("KERNEL_OK")
</pallas_src>

<mosaic_0001>
module attributes {stable_mosaic.version = 11 : i64} {
  func.func @_mean_pool_kernel(%arg0: i32, %arg1: i32, %arg2: memref<2x8x32xf32, #tpu.memory_space<vmem>>, %arg3: memref<2x1x8xf32, #tpu.memory_space<vmem>>, %arg4: memref<2x1x32xf32, #tpu.memory_space<vmem>>, %arg5: memref<2x1x32xf32, #tpu.memory_space<vmem>>, %arg6: memref<2x1x1xf32, #tpu.memory_space<vmem>>) attributes {dimension_semantics = [#tpu.dimension_semantics<parallel>, #tpu.dimension_semantics<arbitrary>], iteration_bounds = array<i64: 1, 1>, scalar_prefetch = 0 : i64, scratch_operands = 2 : i64, tpu.core_type = #tpu.core_type<tc>, window_params = [{transform_indices = @transform_0, window_bounds = array<i64: 2, 8, 32>}, {transform_indices = @transform_1, window_bounds = array<i64: 2, 1, 8>}, {transform_indices = @transform_2, window_bounds = array<i64: 2, 1, 32>}]} {
    %c0_i32 = arith.constant 0 : i32
    %0 = arith.cmpi eq, %arg1, %c0_i32 : i32
    %1 = arith.extui %0 : i1 to i32
    %c0_i32_0 = arith.constant 0 : i32
    %2 = arith.cmpi ne, %1, %c0_i32_0 : i32
    scf.if %2 {
      %cst_21 = arith.constant 0.000000e+00 : f32
      %22 = vector.broadcast %cst_21 : f32 to vector<2x1x32xf32>
      %c0_22 = arith.constant 0 : index
      %c0_23 = arith.constant 0 : index
      %c0_24 = arith.constant 0 : index
      %23 = vector.load %arg5[%c0_22, %c0_23, %c0_24] : memref<2x1x32xf32, #tpu.memory_space<vmem>>, vector<2x1x32xf32>
      tpu.vector_store %arg5[%c0_22, %c0_23, %c0_24], %22 {strides = array<i32>} : memref<2x1x32xf32, #tpu.memory_space<vmem>>, vector<2x1x32xf32>,
      %cst_25 = arith.constant 0.000000e+00 : f32
      %24 = vector.broadcast %cst_25 : f32 to vector<2x1x1xf32>
      %c0_26 = arith.constant 0 : index
      %c0_27 = arith.constant 0 : index
      %c0_28 = arith.constant 0 : index
      %25 = vector.load %arg6[%c0_26, %c0_27, %c0_28] : memref<2x1x1xf32, #tpu.memory_space<vmem>>, vector<2x1x1xf32>
      tpu.vector_store %arg6[%c0_26, %c0_27, %c0_28], %24 {strides = array<i32>} : memref<2x1x1xf32, #tpu.memory_space<vmem>>, vector<2x1x1xf32>,
    } else {
    }
    %c0 = arith.constant 0 : index
    %c0_1 = arith.constant 0 : index
    %c0_2 = arith.constant 0 : index
    %3 = vector.load %arg2[%c0, %c0_1, %c0_2] : memref<2x8x32xf32, #tpu.memory_space<vmem>>, vector<2x8x32xf32>
    %c0_3 = arith.constant 0 : index
    %c0_4 = arith.constant 0 : index
    %c0_5 = arith.constant 0 : index
    %4 = vector.load %arg3[%c0_3, %c0_4, %c0_5] : memref<2x1x8xf32, #tpu.memory_space<vmem>>, vector<2x1x8xf32>
    %c0_6 = arith.constant 0 : index
    %c0_7 = arith.constant 0 : index
    %c0_8 = arith.constant 0 : index
    %5 = vector.load %arg5[%c0_6, %c0_7, %c0_8] : memref<2x1x32xf32, #tpu.memory_space<vmem>>, vector<2x1x32xf32>
    %6 = vector.shape_cast %4 : vector<2x1x8xf32> to vector<2x8xf32>
    %7 = vector.shape_cast %6 : vector<2x8xf32> to vector<2x8x1xf32>
    %8 = vector.broadcast %7 : vector<2x8x1xf32> to vector<2x8x32xf32>
    %9 = arith.mulf %3, %8 : vector<2x8x32xf32>
    %cst = arith.constant dense<0.000000e+00> : vector<2x32xf32>
    %10 = vector.multi_reduction <add>, %9, %cst [1] : vector<2x8x32xf32> to vector<2x32xf32>
    %11 = vector.shape_cast %10 : vector<2x32xf32> to vector<2x1x32xf32>
    %12 = arith.addf %5, %11 : vector<2x1x32xf32>
    %c0_9 = arith.constant 0 : index
    %c0_10 = arith.constant 0 : index
    %c0_11 = arith.constant 0 : index
    %13 = vector.load %arg5[%c0_9, %c0_10, %c0_11] : memref<2x1x32xf32, #tpu.memory_space<vmem>>, vector<2x1x32xf32>
    tpu.vector_store %arg5[%c0_9, %c0_10, %c0_11], %12 {strides = array<i32>} : memref<2x1x32xf32, #tpu.memory_space<vmem>>, vector<2x1x32xf32>,
    %c0_12 = arith.constant 0 : index
    %c0_13 = arith.constant 0 : index
    %c0_14 = arith.constant 0 : index
    %14 = vector.load %arg6[%c0_12, %c0_13, %c0_14] : memref<2x1x1xf32, #tpu.memory_space<vmem>>, vector<2x1x1xf32>
    %cst_15 = arith.constant dense<0.000000e+00> : vector<2x1xf32>
    %15 = vector.multi_reduction <add>, %4, %cst_15 [2] : vector<2x1x8xf32> to vector<2x1xf32>
    %16 = vector.shape_cast %15 : vector<2x1xf32> to vector<2x1x1xf32>
    %17 = arith.addf %14, %16 : vector<2x1x1xf32>
    %c0_16 = arith.constant 0 : index
    %c0_17 = arith.constant 0 : index
    %c0_18 = arith.constant 0 : index
    %18 = vector.load %arg6[%c0_16, %c0_17, %c0_18] : memref<2x1x1xf32, #tpu.memory_space<vmem>>, vector<2x1x1xf32>
    tpu.vector_store %arg6[%c0_16, %c0_17, %c0_18], %17 {strides = array<i32>} : memref<2x1x1xf32, #tpu.memory_space<vmem>>, vector<2x1x1xf32>,
    %c0_i32_19 = arith.constant 0 : i32
    %19 = arith.cmpi eq, %arg1, %c0_i32_19 : i32
    %20 = arith.extui %19 : i1 to i32
    %c0_i32_20 = arith.constant 0 : i32
    %21 = arith.cmpi ne, %20, %c0_i32_20 : i32
    scf.if %21 {
      %c0_21 = arith.constant 0 : index
      %c0_22 = arith.constant 0 : index
      %c0_23 = arith.constant 0 : index
      %22 = vector.load %arg6[%c0_21, %c0_22, %c0_23] : memref<2x1x1xf32, #tpu.memory_space<vmem>>, vector<2x1x1xf32>
      %cst_24 = arith.constant 9.99999971E-10 : f32
      %23 = vector.broadcast %cst_24 : f32 to vector<2x1x1xf32>
      %24 = arith.maximumf %22, %23 : vector<2x1x1xf32>
      %25 = tpu.reciprocal %24 : vector<2x1x1xf32> -> vector<2x1x1xf32>
      %c0_25 = arith.constant 0 : index
      %c0_26 = arith.constant 0 : index
      %c0_27 = arith.constant 0 : index
      %26 = vector.load %arg5[%c0_25, %c0_26, %c0_27] : memref<2x1x32xf32, #tpu.memory_space<vmem>>, vector<2x1x32xf32>
      %27 = vector.broadcast %25 : vector<2x1x1xf32> to vector<2x1x32xf32>
      %28 = arith.mulf %26, %27 : vector<2x1x32xf32>
      %c0_28 = arith.constant 0 : index
      %c0_29 = arith.constant 0 : index
      %c0_30 = arith.constant 0 : index
      %29 = vector.load %arg4[%c0_28, %c0_29, %c0_30] : memref<2x1x32xf32, #tpu.memory_space<vmem>>, vector<2x1x32xf32>
      tpu.vector_store %arg4[%c0_28, %c0_29, %c0_30], %28 {strides = array<i32>} : memref<2x1x32xf32, #tpu.memory_space<vmem>>, vector<2x1x32xf32>,
    } else {
    }
    return
  }
  func.func @transform_0(%arg0: i32, %arg1: i32) -> (i32, i32, i32) {
    %c0_i32 = arith.constant 0 : i32
    %c0_i32_0 = arith.constant 0 : i32
    return %arg0, %arg1, %c0_i32 : i32, i32, i32
  }
  func.func @transform_1(%arg0: i32, %arg1: i32) -> (i32, i32, i32) {
    %c0_i32 = arith.constant 0 : i32
    %c0_i32_0 = arith.constant 0 : i32
    return %arg0, %c0_i32, %arg1 : i32, i32, i32
  }
  func.func @transform_2(%arg0: i32, %arg1: i32) -> (i32, i32, i32) {
    %c0_i32 = arith.constant 0 : i32
    %c0_i32_0 = arith.constant 0 : i32
    %c0_i32_1 = arith.constant 0 : i32
    return %arg0, %c0_i32, %c0_i32_0 : i32, i32, i32
  }
}

</mosaic_0001>

<llo_original>
// kernel: tpu_custom_call.1
$region0: #{tpu_custom_call.1}
  #allocation0 [shape = 'u32[]', space=smem, size = 0x4, offset = 0x4, fixed_abs, tag = 'smem constant byte address 0x4 - core index']
  #allocation1 [shape = 'u32[144,128]{1,0:T(1,128)}', space=vmem, size = 0x12000, scoped, tag = 'internal scratch']
  #allocation2 [shape = 'f32[2,1,32]{2,1,0:T(1,128)}', space=vmem, size = 0x400, scoped, tag = 'scratch operand']
  #allocation3 [shape = 'f32[2,1,1]{2,1,0:T(1,128)}', space=vmem, size = 0x400, scoped, tag = 'scratch operand']
  %s0 = inlined_call_operand.hbm [shape: f32[2,8,32], index: 0, kind: input, shape index: {}]
  %s1 = inlined_call_operand.vmem [shape: f32[2,1,8], index: 1, kind: input, shape index: {}]
  %s2 = inlined_call_operand.hbm [shape: f32[2,1,32], index: 2, kind: output, shape index: {}]
  %s3 = sld [smem:[#allocation0]]
  $region30: #{tpu_custom_call.1} parent=0
    _
  %s5 = ssub.s32 1, %s3
  %s6 = scalar_select 0, %s5, %s3
  $region1: #{tpu_custom_call.1} parent=0
    #allocation4 [shape = 'u8[8192]{0}', space=vmem, size = 0x2000, scoped, tag = 'input window, operand 0, single buffered']
    #allocation5 [shape = 's32[1]{0}', space=sflag, size = 0x4, scoped, tag = 'scoped memory for tpu_custom_call.1']
    #allocation6 [shape = 's32[1]{0}', space=sflag, size = 0x4, scoped, tag = 'scoped memory for tpu_custom_call.1']
    #allocation7 [shape = 'u8[1024]{0}', space=vmem, size = 0x400, scoped, tag = 'output window, operand 0, single buffered']
    %7 = vsyncpa [#allocation5], 0
    %8 = vsyncpa [#allocation6], 0
    // Predicated region
    $region2: #{tpu_custom_call.1} parent=1 // pred_check
      _
    $region3: #{tpu_custom_call.1} parent=1 // pred_check_branch
      %10 = sbr.rel (0) target = $region5
    $region4: #{tpu_custom_call.1} parent=1 // pred_region
      %s12 = ssub.s32 256, 256
      %13 = vsyncadd [#allocation5], %s12
      %s14 = sshll.u32 [#allocation4], 4
      %s15 = int_to_ptr.vmem [resolvable:$true] %s14
      %20 = dma.hbm_to_vmem [thread:$0]  %s0, 256, %s15, [#allocation5], 128, 128, 8
    $region5: #{tpu_custom_call.1} parent=1 // pred_fallthru
      _
    // Predicated region
    $region6: #{tpu_custom_call.1} parent=1 // pred_check
      _
    $region7: #{tpu_custom_call.1} parent=1 // pred_check_branch
      %22 = sbr.rel (0) target = $region9
    $region8: #{tpu_custom_call.1} parent=1 // pred_region
      _
    $region9: #{tpu_custom_call.1} parent=1 // pred_fallthru
      _
    // Predicated region
    $region10: #{tpu_custom_call.1} parent=1 // pred_check
      _
    $region11: #{tpu_custom_call.1} parent=1 // pred_check_branch
      %24 = sbr.rel (0) target = $region13
    $region12: #{tpu_custom_call.1} parent=1 // pred_region
      %25 = dma.done [#allocation5], 256
    $region13: #{tpu_custom_call.1} parent=1 // pred_fallthru
      _
    %p26 = scmp.eq.s32.totalorder 0, 0
    // Predicated region
    $region14: #{tpu_custom_call.1} parent=1 // pred_check
      %p27 = pneg %p26
    $region15: #{tpu_custom_call.1} parent=1 // pred_check_branch
      %29 = sbr.rel (%p27) target = $region17
    $region16: #{tpu_custom_call.1} parent=1 // pred_region
      %vm30 = vcmask 253952
      %31 = vst.msk [vmem:[#allocation2] sm:$0x1] %vm30, 0.0
      %32 = vst.msk [vmem:[#allocation2 + $0x1] sm:$0x1] %vm30, 0.0
      %vm33 = vcmask 0
      %34 = vst.msk [vmem:[#allocation3] sm:$0x1] %vm33, 0.0
      %35 = vst.msk [vmem:[#allocation3 + $0x1] sm:$0x1] %vm33, 0.0
    $region17: #{tpu_custom_call.1} parent=1 // pred_fallthru
      _
    %v36 = vld [vmem:[#allocation4] sm:$0xff]
    %v37 = vld [vmem:[#allocation4 + $0x8] sm:$0xff]
    %v38 = vld [vmem:[%s1] sm:$0x1]
    %v39 = vld [vmem:[%s1 + $0x1] sm:$0x1]
    %v40 = vld [vmem:[#allocation2] sm:$0x1]
    %v41 = vld [vmem:[#allocation2 + $0x1] sm:$0x1]
    %v42 = vlaneseq
    %v43 = vshrl.u32 %v42, 7
    %v44 = vsub.s32 0, %v43
    %v45 = vrot.slane %v38, %v44
    %47 = vbcast.lane.b32.xlu0 %v45, 256
    %v48 = vpop.permute.xlu0 %47
    %v49 = vlaneseq
    %v50 = vshrl.u32 %v49, 7
    %v51 = vsub.s32 0, %v50
    %v52 = vrot.slane %v39, %v51
    %54 = vbcast.lane.b32.xlu0 %v52, 256
    %v55 = vpop.permute.xlu0 %54
    %v56 = vmul.f32 %v36, %v48
    %v57 = vmul.f32 %v37, %v55
    %vm58 = vcmask 261120
    %v59 = vsel %vm58, %v56, 0.0
    %v60 = vrot.slane %v59, 4
    %v61 = vadd.f32 %v59, %v60
    %v62 = vrot.slane %v61, 2
    %v63 = vadd.f32 %v61, %v62
    %v64 = vrot.slane %v63, 1
    %v65 = vadd.f32 %v63, %v64
    %v66 = vsel %vm58, %v57, 0.0
    %v67 = vrot.slane %v66, 4
    %v68 = vadd.f32 %v66, %v67
    %v69 = vrot.slane %v68, 2
    %v70 = vadd.f32 %v68, %v69
    %v71 = vrot.slane %v70, 1
    %v72 = vadd.f32 %v70, %v71
    %v73 = vadd.f32 %v40, %v65
    %v74 = vadd.f32 %v41, %v72
    %vm75 = vcmask 253952
    %76 = vst.msk [vmem:[#allocation2] sm:$0x1] %vm75, %v73
    %77 = vst.msk [vmem:[#allocation2 + $0x1] sm:$0x1] %vm75, %v74
    %v78 = vld [vmem:[#allocation3] sm:$0x1]
    %v79 = vld [vmem:[#allocation3 + $0x1] sm:$0x1]
    %vm80 = vcmask 57344
    %v81 = vsel %vm80, %v38, 0.0
    %82 = vadd.xlane.f32.xlu0 %v81
    %v83 = vpop.xlane.xlu0 %82
    %v84 = vsel %vm80, %v39, 0.0
    %85 = vadd.xlane.f32.xlu0 %v84
    %v86 = vpop.xlane.xlu0 %85
    %v87 = vadd.f32 %v78, %v83
    %v88 = vadd.f32 %v79, %v86
    %vm89 = vcmask 0
    %90 = vst.msk [vmem:[#allocation3] sm:$0x1] %vm89, %v87
    %91 = vst.msk [vmem:[#allocation3 + $0x1] sm:$0x1] %vm89, %v88
    // Predicated region
    $region18: #{tpu_custom_call.1} parent=1 // pred_check
      %p92 = pneg %p26
    $region19: #{tpu_custom_call.1} parent=1 // pred_check_branch
      %94 = sbr.rel (%p92) target = $region21
    $region20: #{tpu_custom_call.1} parent=1 // pred_region
      %v95 = vld [vmem:[#allocation3] sm:$0x1]
      %v96 = vld [vmem:[#allocation3 + $0x1] sm:$0x1]
      %v97 = vmax.f32 %v95, 1e-09
      %v98 = vmax.f32 %v96, 1e-09
      %v99 = vrcp.pop %v97
      %v100 = vrcp.pop %v98
      %v101 = vld [vmem:[#allocation2] sm:$0x1]
      %v102 = vld [vmem:[#allocation2 + $0x1] sm:$0x1]
      %104 = vset.pattern.permute.xlu0 0
      %105 = vperm.xlu0 %104, %v99
      %v106 = vpop.permute.xlu0 %105
      %v108 = vlaneseq
      %v109 = vshrl.u32 %v108, 7
      %v110 = vsub.s32 0, %v109
      %v111 = vrot.slane %v106, %v110
      %113 = vset.pattern.permute.xlu0 0
      %114 = vperm.xlu0 %113, %v100
      %v115 = vpop.permute.xlu0 %114
      %v117 = vlaneseq
      %v118 = vshrl.u32 %v117, 7
      %v119 = vsub.s32 0, %v118
      %v120 = vrot.slane %v115, %v119
      %v121 = vmul.f32 %v101, %v111
      %v122 = vmul.f32 %v102, %v120
      %123 = vst.msk [vmem:[#allocation7] sm:$0x1] %vm75, %v121
      %124 = vst.msk [vmem:[#allocation7 + $0x1] sm:$0x1] %vm75, %v122
    $region21: #{tpu_custom_call.1} parent=1 // pred_fallthru
      _
    // Predicated region
    $region22: #{tpu_custom_call.1} parent=1 // pred_check
      _
    $region23: #{tpu_custom_call.1} parent=1 // pred_check_branch
      %126 = sbr.rel (0) target = $region25
    $region24: #{tpu_custom_call.1} parent=1 // pred_region
      %s128 = ssub.s32 32, 32
      %129 = vsyncadd [#allocation6], %s128
      %s130 = sshll.u32 [#allocation7], 4
      %s131 = int_to_ptr.vmem [resolvable:$true] %s130
      %136 = dma.vmem_to_hbm [thread:$0]  %s131, 32, %s2, [#allocation6], 16, 16, 1
    $region25: #{tpu_custom_call.1} parent=1 // pred_fallthru
      _
    // Predicated region
    $region26: #{tpu_custom_call.1} parent=1 // pred_check
      _
    $region27: #{tpu_custom_call.1} parent=1 // pred_check_branch
      %138 = sbr.rel (0) target = $region29
    $region28: #{tpu_custom_call.1} parent=1 // pred_region
      %139 = dma.done [#allocation6], 32
    $region29: #{tpu_custom_call.1} parent=1 // pred_fallthru
      _
    %140 = vsyncpa [#allocation5], 1
    %141 = vsyncpa [#allocation6], 1

</llo_original>
